<compile_context>
chip_gen: v5e
topology: v5e:2x2
jax: 0.10.0
libtpu: 0.0.40
codegen_flags: <defaults>
</compile_context>

<pallas_src>
import functools

import jax
import jax.numpy as jnp
from jax.experimental import pallas as pl
from jax.experimental.pallas import tpu as pltpu


def _round_up(x, m):
    return ((x + m - 1) // m) * m


# ------------------------------ fused kernel ------------------------------- #

def _decoder_seq_kernel(n_layers, hid, tok_ref, emb_ref, *refs):
    """One grid step = one decoder timestep.  All weights VMEM-resident.

    tok_ref : SMEM int32 [T, batch]            (scalar prefetch)
    emb_ref : VMEM f32   [vocab, emb_dim]
    per layer l (3 refs): w_ih_t [in_l,4H], w_hh_t [H,4H] (mxu dtype), b [1,4H] f32
    then: fc_w [H,out_pad] (mxu dtype), fc_b [1,out_pad] f32,
          state_in [batch, 2*L*H] f32
    outputs: pred [1,batch,out_pad] f32 (per-step block),
             state [batch, 2*L*H] f32 (constant block -> VMEM-resident carry)
    """
    lstm_refs = refs[:3 * n_layers]
    fc_w_ref = refs[3 * n_layers]
    fc_b_ref = refs[3 * n_layers + 1]
    state_in_ref = refs[3 * n_layers + 2]
    pred_ref = refs[3 * n_layers + 3]
    state_ref = refs[3 * n_layers + 4]

    t = pl.program_id(0)
    batch = state_in_ref.shape[0]
    vocab = emb_ref.shape[0]

    # Load initial h/c into the resident state slab on the first step only.
    @pl.when(t == 0)
    def _init():
        state_ref[...] = state_in_ref[...]

    # ---- Embedding: per-row gather via scalar-prefetched token ids ---------
    rows = []
    for r in range(batch):
        tok = tok_ref[t, r]
        tok = jnp.minimum(jnp.maximum(tok, 0), vocab - 1)   # clip like jnp.take
        rows.append(emb_ref[pl.ds(tok, 1), :])               # [1, emb_dim] f32
    x = jnp.concatenate(rows, axis=0)                        # [batch, emb_dim]
    # self.dropout(embedded): identity in eval mode.

    # ---- n_layers single-step LSTM cells, state stays in VMEM --------------
    state = state_ref[...]                                    # one full-vreg load
    new_h, new_c = [], []
    for layer in range(n_layers):
        w_ih_ref = lstm_refs[3 * layer]
        w_hh_ref = lstm_refs[3 * layer + 1]
        b_ref = lstm_refs[3 * layer + 2]

        h_prev = state[:, layer * hid:(layer + 1) * hid]                      # f32
        c_prev = state[:, (n_layers + layer) * hid:(n_layers + layer + 1) * hid]

        # Two dots (no lane concat); f32 accumulation; operands in MXU dtype.
        gates = (
            jnp.dot(x.astype(w_ih_ref.dtype), w_ih_ref[...],
                    preferred_element_type=jnp.float32)
            + jnp.dot(h_prev.astype(w_hh_ref.dtype), w_hh_ref[...],
                      preferred_element_type=jnp.float32)
            + b_ref[...]
        )                                                     # [batch, 4*hid] f32

        # Nonlinearities on the whole gates tensor (2 EUP passes), then slice.
        sig = jax.nn.sigmoid(gates)
        tnh = jnp.tanh(gates)
        i_g = sig[:, 0 * hid:1 * hid]
        f_g = sig[:, 1 * hid:2 * hid]
        g_g = tnh[:, 2 * hid:3 * hid]
        o_g = sig[:, 3 * hid:4 * hid]

        c_new = f_g * c_prev + i_g * g_g
        h_new = o_g * jnp.tanh(c_new)
        new_h.append(h_new)
        new_c.append(c_new)
        x = h_new          # inter-layer dropout = identity (eval mode)

    # Single lane-dense state write-back per step.
    state_ref[...] = jnp.concatenate(new_h + new_c, axis=1).astype(state_ref.dtype)

    # ---- fc_out: lane-dense padded logits -----------------------------------
    logits = (jnp.dot(x.astype(fc_w_ref.dtype), fc_w_ref[...],
                      preferred_element_type=jnp.float32)
              + fc_b_ref[...])
    pred_ref[0] = logits.astype(pred_ref.dtype)


# ----------------------------- Decoder wrapper ----------------------------- #

def init_decoder_params(key, output_dim, emb_dim, hid_dim, n_layers):
    """PyTorch-native layout parameters (same shapes as the nn.Module)."""
    ks = iter(jax.random.split(key, 1 + 4 * n_layers + 2))
    params = {"embedding": jax.random.normal(next(ks), (output_dim, emb_dim),
                                             dtype=jnp.float32)}
    bound = 1.0 / float(hid_dim) ** 0.5
    layers = []
    for layer in range(n_layers):
        in_dim = emb_dim if layer == 0 else hid_dim
        layers.append({
            "w_ih": jax.random.uniform(next(ks), (4 * hid_dim, in_dim),
                                       minval=-bound, maxval=bound),
            "w_hh": jax.random.uniform(next(ks), (4 * hid_dim, hid_dim),
                                       minval=-bound, maxval=bound),
            "b_ih": jax.random.uniform(next(ks), (4 * hid_dim,),
                                       minval=-bound, maxval=bound),
            "b_hh": jax.random.uniform(next(ks), (4 * hid_dim,),
                                       minval=-bound, maxval=bound),
        })
    params["lstm"] = layers
    params["fc_w"] = jax.random.uniform(next(ks), (output_dim, hid_dim),
                                        minval=-bound, maxval=bound)
    params["fc_b"] = jax.random.uniform(next(ks), (output_dim,),
                                        minval=-bound, maxval=bound)
    return params


@functools.partial(jax.jit, static_argnames=("mxu_dtype",))
def decoder_forward_seq(params, tokens_seq, hidden, cell, *, mxu_dtype=jnp.float32):
    """T fused decoder steps in a single pallas_call.

    tokens_seq: int32 [T, batch]
    hidden/cell: f32 [n_layers, batch, hid]
    returns (predictions [T, batch, output_dim], hidden, cell)
    """
    T, batch = tokens_seq.shape
    n_layers, _, hid = hidden.shape
    vocab, emb_dim = params["embedding"].shape
    output_dim = params["fc_w"].shape[0]
    out_pad = _round_up(output_dim, 128)

    # ---- layout plumbing (PyTorch-native -> kernel layout) -----------------
    emb = params["embedding"].astype(jnp.float32)
    lstm_inputs = []
    for lp in params["lstm"]:
        lstm_inputs += [
            lp["w_ih"].T.astype(mxu_dtype),                  # [in_l, 4H]
            lp["w_hh"].T.astype(mxu_dtype),                  # [H, 4H]
            (lp["b_ih"] + lp["b_hh"])[None, :].astype(jnp.float32),  # [1, 4H]
        ]
    fc_w_pad = (jnp.zeros((hid, out_pad), mxu_dtype)
                .at[:, :output_dim].set(params["fc_w"].T.astype(mxu_dtype)))
    fc_b_pad = (jnp.zeros((1, out_pad), jnp.float32)
                .at[0, :output_dim].set(params["fc_b"].astype(jnp.float32)))

    # lane-dense packed state: [batch, 2*L*H]  (= [8,128] at demo sizes)
    h_pack = jnp.transpose(hidden, (1, 0, 2)).reshape(batch, n_layers * hid)
    c_pack = jnp.transpose(cell, (1, 0, 2)).reshape(batch, n_layers * hid)
    state_in = jnp.concatenate([h_pack, c_pack], axis=1).astype(jnp.float32)

    def _const_spec(shape):
        zeros = (0,) * len(shape)
        return pl.BlockSpec(shape, lambda t, tok: zeros)

    in_specs = [_const_spec(emb.shape)]
    in_specs += [_const_spec(a.shape) for a in lstm_inputs]
    in_specs += [_const_spec(fc_w_pad.shape), _const_spec(fc_b_pad.shape),
                 _const_spec(state_in.shape)]

    grid_spec = pltpu.PrefetchScalarGridSpec(
        num_scalar_prefetch=1,
        grid=(T,),
        in_specs=in_specs,
        out_specs=[
            pl.BlockSpec((1, batch, out_pad), lambda t, tok: (t, 0, 0)),
            pl.BlockSpec((batch, 2 * n_layers * hid), lambda t, tok: (0, 0)),
        ],
    )

    pred_pad, state_out = pl.pallas_call(
        functools.partial(_decoder_seq_kernel, n_layers, hid),
        grid_spec=grid_spec,
        out_shape=(
            jax.ShapeDtypeStruct((T, batch, out_pad), jnp.float32),
            jax.ShapeDtypeStruct((batch, 2 * n_layers * hid), jnp.float32),
        ),
        compiler_params=pltpu.CompilerParams(
            dimension_semantics=("arbitrary",),      # recurrent time axis
            vmem_limit_bytes=32 * 1024 * 1024,       # explicit, v5e/v6e/v7x safe
        ),
    )(tokens_seq.astype(jnp.int32), emb, *lstm_inputs, fc_w_pad, fc_b_pad, state_in)

    predictions = pred_pad[:, :, :output_dim]        # slice lane padding back off
    h_out = (state_out[:, :n_layers * hid]
             .reshape(batch, n_layers, hid).transpose(1, 0, 2))
    c_out = (state_out[:, n_layers * hid:]
             .reshape(batch, n_layers, hid).transpose(1, 0, 2))
    return predictions, h_out, c_out


def decoder_forward(params, tokens, hidden, cell, *, mxu_dtype=jnp.float32):
    """Exact Decoder.forward semantics (single timestep)."""
    preds, h, c = decoder_forward_seq(params, tokens[None, :], hidden, cell,
                                      mxu_dtype=mxu_dtype)
    return preds[0], h, c


# ----------------------------- pure-JAX reference --------------------------- #

_HI = jax.lax.Precision.HIGHEST


def decoder_reference_step(params, tokens, hidden, cell):
    """Reference on PyTorch-native weight layout (validates layout transform)."""
    x = jnp.take(params["embedding"], tokens, axis=0)
    hs, cs = [], []
    for layer, lp in enumerate(params["lstm"]):
        h_prev, c_prev = hidden[layer], cell[layer]
        hid = h_prev.shape[-1]
        gates = (jnp.dot(x, lp["w_ih"].T, precision=_HI)
                 + jnp.dot(h_prev, lp["w_hh"].T, precision=_HI)
                 + lp["b_ih"] + lp["b_hh"])
        i_g = jax.nn.sigmoid(gates[:, :hid])
        f_g = jax.nn.sigmoid(gates[:, hid:2 * hid])
        g_g = jnp.tanh(gates[:, 2 * hid:3 * hid])
        o_g = jax.nn.sigmoid(gates[:, 3 * hid:])
        c_new = f_g * c_prev + i_g * g_g
        h_new = o_g * jnp.tanh(c_new)
        hs.append(h_new)
        cs.append(c_new)
        x = h_new
    pred = jnp.dot(x, params["fc_w"].T, precision=_HI) + params["fc_b"]
    return pred, jnp.stack(hs), jnp.stack(cs)


def decoder_reference_seq(params, tokens_seq, hidden, cell):
    preds = []
    for t in range(tokens_seq.shape[0]):
        p, hidden, cell = decoder_reference_step(params, tokens_seq[t], hidden, cell)
        preds.append(p)
    return jnp.stack(preds), hidden, cell


# ---------------------------------- main ----------------------------------- #

if __name__ == "__main__":
    OUTPUT_DIM = 64   # vocab size
    EMB_DIM = 32
    HID_DIM = 32
    N_LAYERS = 2
    BATCH = 8
    T = 4             # decode steps fused into one kernel launch

    key = jax.random.PRNGKey(0)
    k_param, k_tok, k_h, k_c = jax.random.split(key, 4)

    params = init_decoder_params(k_param, OUTPUT_DIM, EMB_DIM, HID_DIM, N_LAYERS)
    tokens_seq = jax.random.randint(k_tok, (T, BATCH), 0, OUTPUT_DIM, dtype=jnp.int32)
    hidden = jax.random.normal(k_h, (N_LAYERS, BATCH, HID_DIM), dtype=jnp.float32)
    cell = jax.random.normal(k_c, (N_LAYERS, BATCH, HID_DIM), dtype=jnp.float32)

    # --- single step (exact Decoder.forward semantics), f32 path, tight tol ---
    pred, h1, c1 = decoder_forward(params, tokens_seq[0], hidden, cell)
    jax.block_until_ready((pred, h1, c1))
    assert pred.shape == (BATCH, OUTPUT_DIM)
    assert h1.shape == (N_LAYERS, BATCH, HID_DIM)
    assert c1.shape == (N_LAYERS, BATCH, HID_DIM)

    ref_p, ref_h, ref_c = decoder_reference_step(params, tokens_seq[0], hidden, cell)
    assert jnp.allclose(pred, ref_p, rtol=1e-5, atol=1e-5)
    assert jnp.allclose(h1, ref_h, rtol=1e-5, atol=1e-5)
    assert jnp.allclose(c1, ref_c, rtol=1e-5, atol=1e-5)

    # --- fused multi-step decode (time loop inside one pallas_call) ---
    preds, hT, cT = decoder_forward_seq(params, tokens_seq, hidden, cell)
    jax.block_until_ready((preds, hT, cT))
    ref_ps, ref_hT, ref_cT = decoder_reference_seq(params, tokens_seq, hidden, cell)
    assert preds.shape == (T, BATCH, OUTPUT_DIM)
    assert jnp.allclose(preds, ref_ps, rtol=1e-5, atol=1e-5)
    assert jnp.allclose(hT, ref_hT, rtol=1e-5, atol=1e-5)
    assert jnp.allclose(cT, ref_cT, rtol=1e-5, atol=1e-5)

    # --- bf16 MXU-operand path (v6e/v7x); gate/elementwise math stays f32 ---
    preds_bf, hT_bf, cT_bf = decoder_forward_seq(
        params, tokens_seq, hidden, cell, mxu_dtype=jnp.bfloat16)
    jax.block_until_ready((preds_bf, hT_bf, cT_bf))
    assert jnp.allclose(preds_bf, ref_ps, rtol=5e-2, atol=5e-2)
    assert jnp.allclose(hT_bf, ref_hT, rtol=5e-2, atol=5e-2)
    assert jnp.allclose(cT_bf, ref_cT, rtol=5e-2, atol=5e-2)

    print("KERNEL_OK")
</pallas_src>

<mosaic_0001>
module attributes {stable_mosaic.version = 11 : i64} {
  func.func @_decoder_seq_kernel(%arg0: i32, %arg1: memref<1x8xi32, #tpu.memory_space<smem>>, %arg2: memref<64x32xf32, #tpu.memory_space<vmem>>, %arg3: memref<32x128xf32, #tpu.memory_space<vmem>>, %arg4: memref<32x128xf32, #tpu.memory_space<vmem>>, %arg5: memref<1x128xf32, #tpu.memory_space<vmem>>, %arg6: memref<32x128xf32, #tpu.memory_space<vmem>>, %arg7: memref<32x128xf32, #tpu.memory_space<vmem>>, %arg8: memref<1x128xf32, #tpu.memory_space<vmem>>, %arg9: memref<32x128xf32, #tpu.memory_space<vmem>>, %arg10: memref<1x128xf32, #tpu.memory_space<vmem>>, %arg11: memref<8x128xf32, #tpu.memory_space<vmem>>, %arg12: memref<1x8x128xf32, #tpu.memory_space<vmem>>, %arg13: memref<8x128xf32, #tpu.memory_space<vmem>>) attributes {dimension_semantics = [#tpu.dimension_semantics<arbitrary>], iteration_bounds = array<i64: 1>, scalar_prefetch = 1 : i64, scratch_operands = 0 : i64, tpu.core_type = #tpu.core_type<tc>, window_params = [{pipeline_mode = #tpu.pipeline_mode<synchronous>, transform_indices = @transform_0, window_bounds = array<i64: 64, 32>}, {pipeline_mode = #tpu.pipeline_mode<synchronous>, transform_indices = @transform_1, window_bounds = array<i64: 32, 128>}, {pipeline_mode = #tpu.pipeline_mode<synchronous>, transform_indices = @transform_2, window_bounds = array<i64: 32, 128>}, {pipeline_mode = #tpu.pipeline_mode<synchronous>, transform_indices = @transform_3, window_bounds = array<i64: 1, 128>}, {pipeline_mode = #tpu.pipeline_mode<synchronous>, transform_indices = @transform_4, window_bounds = array<i64: 32, 128>}, {pipeline_mode = #tpu.pipeline_mode<synchronous>, transform_indices = @transform_5, window_bounds = array<i64: 32, 128>}, {pipeline_mode = #tpu.pipeline_mode<synchronous>, transform_indices = @transform_6, window_bounds = array<i64: 1, 128>}, {pipeline_mode = #tpu.pipeline_mode<synchronous>, transform_indices = @transform_7, window_bounds = array<i64: 32, 128>}, {pipeline_mode = #tpu.pipeline_mode<synchronous>, transform_indices = @transform_8, window_bounds = array<i64: 1, 128>}, {pipeline_mode = #tpu.pipeline_mode<synchronous>, transform_indices = @transform_9, window_bounds = array<i64: 8, 128>}, {transform_indices = @transform_10, window_bounds = array<i64: 1, 8, 128>}, {pipeline_mode = #tpu.pipeline_mode<synchronous>, transform_indices = @transform_11, window_bounds = array<i64: 8, 128>}]} {
    %c0_i32 = arith.constant 0 : i32
    %0 = arith.cmpi eq, %arg0, %c0_i32 : i32
    %1 = arith.extui %0 : i1 to i32
    %c0_i32_0 = arith.constant 0 : i32
    %2 = arith.cmpi ne, %1, %c0_i32_0 : i32
    scf.if %2 {
      %c0_53 = arith.constant 0 : index
      %c0_54 = arith.constant 0 : index
      %113 = vector.load %arg11[%c0_53, %c0_54] : memref<8x128xf32, #tpu.memory_space<vmem>>, vector<8x128xf32>
      %c0_55 = arith.constant 0 : index
      %c0_56 = arith.constant 0 : index
      %114 = vector.load %arg13[%c0_55, %c0_56] : memref<8x128xf32, #tpu.memory_space<vmem>>, vector<8x128xf32>
      tpu.vector_store %arg13[%c0_55, %c0_56], %113 {strides = array<i32>} : memref<8x128xf32, #tpu.memory_space<vmem>>, vector<8x128xf32>,
    } else {
    }
    %3 = arith.index_cast %arg0 : i32 to index
    %c0 = arith.constant 0 : index
    %4 = memref.load %arg1[%3, %c0] : memref<1x8xi32, #tpu.memory_space<smem>>
    %c0_i32_1 = arith.constant 0 : i32
    %5 = arith.maxsi %4, %c0_i32_1 : i32
    %c63_i32 = arith.constant 63 : i32
    %6 = arith.minsi %5, %c63_i32 : i32
    %7 = arith.index_cast %6 : i32 to index
    %c0_2 = arith.constant 0 : index
    %8 = vector.load %arg2[%7, %c0_2] : memref<64x32xf32, #tpu.memory_space<vmem>>, vector<1x32xf32>
    %9 = arith.index_cast %arg0 : i32 to index
    %c1 = arith.constant 1 : index
    %10 = memref.load %arg1[%9, %c1] : memref<1x8xi32, #tpu.memory_space<smem>>
    %c0_i32_3 = arith.constant 0 : i32
    %11 = arith.maxsi %10, %c0_i32_3 : i32
    %c63_i32_4 = arith.constant 63 : i32
    %12 = arith.minsi %11, %c63_i32_4 : i32
    %13 = arith.index_cast %12 : i32 to index
    %c0_5 = arith.constant 0 : index
    %14 = vector.load %arg2[%13, %c0_5] : memref<64x32xf32, #tpu.memory_space<vmem>>, vector<1x32xf32>
    %15 = arith.index_cast %arg0 : i32 to index
    %c2 = arith.constant 2 : index
    %16 = memref.load %arg1[%15, %c2] : memref<1x8xi32, #tpu.memory_space<smem>>
    %c0_i32_6 = arith.constant 0 : i32
    %17 = arith.maxsi %16, %c0_i32_6 : i32
    %c63_i32_7 = arith.constant 63 : i32
    %18 = arith.minsi %17, %c63_i32_7 : i32
    %19 = arith.index_cast %18 : i32 to index
    %c0_8 = arith.constant 0 : index
    %20 = vector.load %arg2[%19, %c0_8] : memref<64x32xf32, #tpu.memory_space<vmem>>, vector<1x32xf32>
    %21 = arith.index_cast %arg0 : i32 to index
    %c3 = arith.constant 3 : index
    %22 = memref.load %arg1[%21, %c3] : memref<1x8xi32, #tpu.memory_space<smem>>
    %c0_i32_9 = arith.constant 0 : i32
    %23 = arith.maxsi %22, %c0_i32_9 : i32
    %c63_i32_10 = arith.constant 63 : i32
    %24 = arith.minsi %23, %c63_i32_10 : i32
    %25 = arith.index_cast %24 : i32 to index
    %c0_11 = arith.constant 0 : index
    %26 = vector.load %arg2[%25, %c0_11] : memref<64x32xf32, #tpu.memory_space<vmem>>, vector<1x32xf32>
    %27 = arith.index_cast %arg0 : i32 to index
    %c4 = arith.constant 4 : index
    %28 = memref.load %arg1[%27, %c4] : memref<1x8xi32, #tpu.memory_space<smem>>
    %c0_i32_12 = arith.constant 0 : i32
    %29 = arith.maxsi %28, %c0_i32_12 : i32
    %c63_i32_13 = arith.constant 63 : i32
    %30 = arith.minsi %29, %c63_i32_13 : i32
    %31 = arith.index_cast %30 : i32 to index
    %c0_14 = arith.constant 0 : index
    %32 = vector.load %arg2[%31, %c0_14] : memref<64x32xf32, #tpu.memory_space<vmem>>, vector<1x32xf32>
    %33 = arith.index_cast %arg0 : i32 to index
    %c5 = arith.constant 5 : index
    %34 = memref.load %arg1[%33, %c5] : memref<1x8xi32, #tpu.memory_space<smem>>
    %c0_i32_15 = arith.constant 0 : i32
    %35 = arith.maxsi %34, %c0_i32_15 : i32
    %c63_i32_16 = arith.constant 63 : i32
    %36 = arith.minsi %35, %c63_i32_16 : i32
    %37 = arith.index_cast %36 : i32 to index
    %c0_17 = arith.constant 0 : index
    %38 = vector.load %arg2[%37, %c0_17] : memref<64x32xf32, #tpu.memory_space<vmem>>, vector<1x32xf32>
    %39 = arith.index_cast %arg0 : i32 to index
    %c6 = arith.constant 6 : index
    %40 = memref.load %arg1[%39, %c6] : memref<1x8xi32, #tpu.memory_space<smem>>
    %c0_i32_18 = arith.constant 0 : i32
    %41 = arith.maxsi %40, %c0_i32_18 : i32
    %c63_i32_19 = arith.constant 63 : i32
    %42 = arith.minsi %41, %c63_i32_19 : i32
    %43 = arith.index_cast %42 : i32 to index
    %c0_20 = arith.constant 0 : index
    %44 = vector.load %arg2[%43, %c0_20] : memref<64x32xf32, #tpu.memory_space<vmem>>, vector<1x32xf32>
    %45 = arith.index_cast %arg0 : i32 to index
    %c7 = arith.constant 7 : index
    %46 = memref.load %arg1[%45, %c7] : memref<1x8xi32, #tpu.memory_space<smem>>
    %c0_i32_21 = arith.constant 0 : i32
    %47 = arith.maxsi %46, %c0_i32_21 : i32
    %c63_i32_22 = arith.constant 63 : i32
    %48 = arith.minsi %47, %c63_i32_22 : i32
    %49 = arith.index_cast %48 : i32 to index
    %c0_23 = arith.constant 0 : index
    %50 = vector.load %arg2[%49, %c0_23] : memref<64x32xf32, #tpu.memory_space<vmem>>, vector<1x32xf32>
    %51 = tpu.concatenate %8, %14, %20, %26, %32, %38, %44, %50 in 0 : vector<1x32xf32>, vector<1x32xf32>, vector<1x32xf32>, vector<1x32xf32>, vector<1x32xf32>, vector<1x32xf32>, vector<1x32xf32>, vector<1x32xf32> -> vector<8x32xf32>
    %c0_24 = arith.constant 0 : index
    %c0_25 = arith.constant 0 : index
    %52 = vector.load %arg13[%c0_24, %c0_25] : memref<8x128xf32, #tpu.memory_space<vmem>>, vector<8x128xf32>
    %53 = vector.extract_strided_slice %52 {offsets = [0, 0], sizes = [8, 32], strides = [1, 1]} : vector<8x128xf32> to vector<8x32xf32>
    %54 = vector.extract_strided_slice %52 {offsets = [0, 64], sizes = [8, 32], strides = [1, 1]} : vector<8x128xf32> to vector<8x32xf32>
    %c0_26 = arith.constant 0 : index
    %c0_27 = arith.constant 0 : index
    %55 = vector.load %arg3[%c0_26, %c0_27] : memref<32x128xf32, #tpu.memory_space<vmem>>, vector<32x128xf32>
    %cst = arith.constant dense<0.000000e+00> : vector<8x128xf32>
    %56 = tpu.matmul %51, %55, %cst {dimension_numbers = #tpu.dot_dimension_numbers<[1], [0], [0], [1], [0, 0, 1, 1], [], []>} : vector<8x32xf32>, vector<32x128xf32>, vector<8x128xf32> -> vector<8x128xf32>
    %c0_28 = arith.constant 0 : index
    %c0_29 = arith.constant 0 : index
    %57 = vector.load %arg4[%c0_28, %c0_29] : memref<32x128xf32, #tpu.memory_space<vmem>>, vector<32x128xf32>
    %cst_30 = arith.constant dense<0.000000e+00> : vector<8x128xf32>
    %58 = tpu.matmul %53, %57, %cst_30 {dimension_numbers = #tpu.dot_dimension_numbers<[1], [0], [0], [1], [0, 0, 1, 1], [], []>} : vector<8x32xf32>, vector<32x128xf32>, vector<8x128xf32> -> vector<8x128xf32>
    %59 = arith.addf %56, %58 : vector<8x128xf32>
    %c0_31 = arith.constant 0 : index
    %c0_32 = arith.constant 0 : index
    %60 = vector.load %arg5[%c0_31, %c0_32] : memref<1x128xf32, #tpu.memory_space<vmem>>, vector<1x128xf32>
    %61 = vector.broadcast %60 : vector<1x128xf32> to vector<8x128xf32>
    %62 = arith.addf %59, %61 : vector<8x128xf32>
    %63 = arith.negf %62 : vector<8x128xf32>
    %64 = math.exp %63 : vector<8x128xf32>
    %cst_33 = arith.constant 1.000000e+00 : f32
    %65 = vector.broadcast %cst_33 : f32 to vector<8x128xf32>
    %66 = arith.addf %65, %64 : vector<8x128xf32>
    %67 = arith.divf %65, %66 : vector<8x128xf32>
    %68 = math.tanh %62 : vector<8x128xf32>
    %69 = vector.extract_strided_slice %67 {offsets = [0, 0], sizes = [8, 32], strides = [1, 1]} : vector<8x128xf32> to vector<8x32xf32>
    %70 = vector.extract_strided_slice %67 {offsets = [0, 32], sizes = [8, 32], strides = [1, 1]} : vector<8x128xf32> to vector<8x32xf32>
    %71 = vector.extract_strided_slice %68 {offsets = [0, 64], sizes = [8, 32], strides = [1, 1]} : vector<8x128xf32> to vector<8x32xf32>
    %72 = vector.extract_strided_slice %67 {offsets = [0, 96], sizes = [8, 32], strides = [1, 1]} : vector<8x128xf32> to vector<8x32xf32>
    %73 = arith.mulf %70, %54 : vector<8x32xf32>
    %74 = arith.mulf %69, %71 : vector<8x32xf32>
    %75 = arith.addf %73, %74 : vector<8x32xf32>
    %76 = math.tanh %75 : vector<8x32xf32>
    %77 = arith.mulf %72, %76 : vector<8x32xf32>
    %78 = vector.extract_strided_slice %52 {offsets = [0, 32], sizes = [8, 32], strides = [1, 1]} : vector<8x128xf32> to vector<8x32xf32>
    %79 = vector.extract_strided_slice %52 {offsets = [0, 96], sizes = [8, 32], strides = [1, 1]} : vector<8x128xf32> to vector<8x32xf32>
    %c0_34 = arith.constant 0 : index
    %c0_35 = arith.constant 0 : index
    %80 = vector.load %arg6[%c0_34, %c0_35] : memref<32x128xf32, #tpu.memory_space<vmem>>, vector<32x128xf32>
    %cst_36 = arith.constant dense<0.000000e+00> : vector<8x128xf32>
    %81 = tpu.matmul %77, %80, %cst_36 {dimension_numbers = #tpu.dot_dimension_numbers<[1], [0], [0], [1], [0, 0, 1, 1], [], []>} : vector<8x32xf32>, vector<32x128xf32>, vector<8x128xf32> -> vector<8x128xf32>
    %c0_37 = arith.constant 0 : index
    %c0_38 = arith.constant 0 : index
    %82 = vector.load %arg7[%c0_37, %c0_38] : memref<32x128xf32, #tpu.memory_space<vmem>>, vector<32x128xf32>
    %cst_39 = arith.constant dense<0.000000e+00> : vector<8x128xf32>
    %83 = tpu.matmul %78, %82, %cst_39 {dimension_numbers = #tpu.dot_dimension_numbers<[1], [0], [0], [1], [0, 0, 1, 1], [], []>} : vector<8x32xf32>, vector<32x128xf32>, vector<8x128xf32> -> vector<8x128xf32>
    %84 = arith.addf %81, %83 : vector<8x128xf32>
    %c0_40 = arith.constant 0 : index
    %c0_41 = arith.constant 0 : index
    %85 = vector.load %arg8[%c0_40, %c0_41] : memref<1x128xf32, #tpu.memory_space<vmem>>, vector<1x128xf32>
    %86 = vector.broadcast %85 : vector<1x128xf32> to vector<8x128xf32>
    %87 = arith.addf %84, %86 : vector<8x128xf32>
    %88 = arith.negf %87 : vector<8x128xf32>
    %89 = math.exp %88 : vector<8x128xf32>
    %cst_42 = arith.constant 1.000000e+00 : f32
    %90 = vector.broadcast %cst_42 : f32 to vector<8x128xf32>
    %91 = arith.addf %90, %89 : vector<8x128xf32>
    %92 = arith.divf %90, %91 : vector<8x128xf32>
    %93 = math.tanh %87 : vector<8x128xf32>
    %94 = vector.extract_strided_slice %92 {offsets = [0, 0], sizes = [8, 32], strides = [1, 1]} : vector<8x128xf32> to vector<8x32xf32>
    %95 = vector.extract_strided_slice %92 {offsets = [0, 32], sizes = [8, 32], strides = [1, 1]} : vector<8x128xf32> to vector<8x32xf32>
    %96 = vector.extract_strided_slice %93 {offsets = [0, 64], sizes = [8, 32], strides = [1, 1]} : vector<8x128xf32> to vector<8x32xf32>
    %97 = vector.extract_strided_slice %92 {offsets = [0, 96], sizes = [8, 32], strides = [1, 1]} : vector<8x128xf32> to vector<8x32xf32>
    %98 = arith.mulf %95, %79 : vector<8x32xf32>
    %99 = arith.mulf %94, %96 : vector<8x32xf32>
    %100 = arith.addf %98, %99 : vector<8x32xf32>
    %101 = math.tanh %100 : vector<8x32xf32>
    %102 = arith.mulf %97, %101 : vector<8x32xf32>
    %103 = tpu.concatenate %77, %102, %75, %100 in 1 : vector<8x32xf32>, vector<8x32xf32>, vector<8x32xf32>, vector<8x32xf32> -> vector<8x128xf32>
    %c0_43 = arith.constant 0 : index
    %c0_44 = arith.constant 0 : index
    %104 = vector.load %arg13[%c0_43, %c0_44] : memref<8x128xf32, #tpu.memory_space<vmem>>, vector<8x128xf32>
    tpu.vector_store %arg13[%c0_43, %c0_44], %103 {strides = array<i32>} : memref<8x128xf32, #tpu.memory_space<vmem>>, vector<8x128xf32>,
    %c0_45 = arith.constant 0 : index
    %c0_46 = arith.constant 0 : index
    %105 = vector.load %arg9[%c0_45, %c0_46] : memref<32x128xf32, #tpu.memory_space<vmem>>, vector<32x128xf32>
    %cst_47 = arith.constant dense<0.000000e+00> : vector<8x128xf32>
    %106 = tpu.matmul %102, %105, %cst_47 {dimension_numbers = #tpu.dot_dimension_numbers<[1], [0], [0], [1], [0, 0, 1, 1], [], []>} : vector<8x32xf32>, vector<32x128xf32>, vector<8x128xf32> -> vector<8x128xf32>
    %c0_48 = arith.constant 0 : index
    %c0_49 = arith.constant 0 : index
    %107 = vector.load %arg10[%c0_48, %c0_49] : memref<1x128xf32, #tpu.memory_space<vmem>>, vector<1x128xf32>
    %108 = vector.broadcast %107 : vector<1x128xf32> to vector<8x128xf32>
    %109 = arith.addf %106, %108 : vector<8x128xf32>
    %c0_50 = arith.constant 0 : index
    %c0_51 = arith.constant 0 : index
    %c0_52 = arith.constant 0 : index
    %110 = vector.load %arg12[%c0_50, %c0_51, %c0_52] : memref<1x8x128xf32, #tpu.memory_space<vmem>>, vector<1x8x128xf32>
    %111 = vector.shape_cast %110 : vector<1x8x128xf32> to vector<8x128xf32>
    %112 = vector.shape_cast %109 : vector<8x128xf32> to vector<1x8x128xf32>
    tpu.vector_store %arg12[%c0_50, %c0_51, %c0_52], %112 {strides = array<i32>} : memref<1x8x128xf32, #tpu.memory_space<vmem>>, vector<1x8x128xf32>,
    return
  }
  func.func @transform_0(%arg0: i32, %arg1: memref<1x8xi32, #tpu.memory_space<smem>>) -> (i32, i32) {
    %c0_i32 = arith.constant 0 : i32
    %c0_i32_0 = arith.constant 0 : i32
    %c0_i32_1 = arith.constant 0 : i32
    return %c0_i32, %c0_i32_0 : i32, i32
  }
  func.func @transform_1(%arg0: i32, %arg1: memref<1x8xi32, #tpu.memory_space<smem>>) -> (i32, i32) {
    %c0_i32 = arith.constant 0 : i32
    %c0_i32_0 = arith.constant 0 : i32
    %c0_i32_1 = arith.constant 0 : i32
    return %c0_i32, %c0_i32_0 : i32, i32
  }
  func.func @transform_2(%arg0: i32, %arg1: memref<1x8xi32, #tpu.memory_space<smem>>) -> (i32, i32) {
    %c0_i32 = arith.constant 0 : i32
    %c0_i32_0 = arith.constant 0 : i32
    %c0_i32_1 = arith.constant 0 : i32
    return %c0_i32, %c0_i32_0 : i32, i32
  }
  func.func @transform_3(%arg0: i32, %arg1: memref<1x8xi32, #tpu.memory_space<smem>>) -> (i32, i32) {
    %c0_i32 = arith.constant 0 : i32
    %c0_i32_0 = arith.constant 0 : i32
    %c0_i32_1 = arith.constant 0 : i32
    return %c0_i32, %c0_i32_0 : i32, i32
  }
  func.func @transform_4(%arg0: i32, %arg1: memref<1x8xi32, #tpu.memory_space<smem>>) -> (i32, i32) {
    %c0_i32 = arith.constant 0 : i32
    %c0_i32_0 = arith.constant 0 : i32
    %c0_i32_1 = arith.constant 0 : i32
    return %c0_i32, %c0_i32_0 : i32, i32
  }
  func.func @transform_5(%arg0: i32, %arg1: memref<1x8xi32, #tpu.memory_space<smem>>) -> (i32, i32) {
    %c0_i32 = arith.constant 0 : i32
    %c0_i32_0 = arith.constant 0 : i32
    %c0_i32_1 = arith.constant 0 : i32
    return %c0_i32, %c0_i32_0 : i32, i32
  }
  func.func @transform_6(%arg0: i32, %arg1: memref<1x8xi32, #tpu.memory_space<smem>>) -> (i32, i32) {
    %c0_i32 = arith.constant 0 : i32
    %c0_i32_0 = arith.constant 0 : i32
    %c0_i32_1 = arith.constant 0 : i32
    return %c0_i32, %c0_i32_0 : i32, i32
  }
  func.func @transform_7(%arg0: i32, %arg1: memref<1x8xi32, #tpu.memory_space<smem>>) -> (i32, i32) {
    %c0_i32 = arith.constant 0 : i32
    %c0_i32_0 = arith.constant 0 : i32
    %c0_i32_1 = arith.constant 0 : i32
    return %c0_i32, %c0_i32_0 : i32, i32
  }
  func.func @transform_8(%arg0: i32, %arg1: memref<1x8xi32, #tpu.memory_space<smem>>) -> (i32, i32) {
    %c0_i32 = arith.constant 0 : i32
    %c0_i32_0 = arith.constant 0 : i32
    %c0_i32_1 = arith.constant 0 : i32
    return %c0_i32, %c0_i32_0 : i32, i32
  }
  func.func @transform_9(%arg0: i32, %arg1: memref<1x8xi32, #tpu.memory_space<smem>>) -> (i32, i32) {
    %c0_i32 = arith.constant 0 : i32
    %c0_i32_0 = arith.constant 0 : i32
    %c0_i32_1 = arith.constant 0 : i32
    return %c0_i32, %c0_i32_0 : i32, i32
  }
  func.func @transform_10(%arg0: i32, %arg1: memref<1x8xi32, #tpu.memory_space<smem>>) -> (i32, i32, i32) {
    %c0_i32 = arith.constant 0 : i32
    %c0_i32_0 = arith.constant 0 : i32
    %c0_i32_1 = arith.constant 0 : i32
    return %arg0, %c0_i32, %c0_i32_0 : i32, i32, i32
  }
  func.func @transform_11(%arg0: i32, %arg1: memref<1x8xi32, #tpu.memory_space<smem>>) -> (i32, i32) {
    %c0_i32 = arith.constant 0 : i32
    %c0_i32_0 = arith.constant 0 : i32
    %c0_i32_1 = arith.constant 0 : i32
    return %c0_i32, %c0_i32_0 : i32, i32
  }
}

</mosaic_0001>

<llo_original>
// kernel: decoder_forward_seq.1
$region0: #{decoder_forward_seq.1}
  #allocation0 [shape = 'u32[]', space=smem, size = 0x4, offset = 0x4, fixed_abs, tag = 'smem constant byte address 0x4 - core index']
  #allocation1 [shape = 'u32[72,128]{1,0:T(1,128)}', space=vmem, size = 0x9000, scoped, tag = 'internal scratch']
  #allocation2 [shape = 's32[1]{0}', space=sflag, size = 0x4, scoped, tag = 'scoped memory for decoder_forward_seq.1']
  #allocation3 [shape = 'u8[512]{0}', space=smem, size = 0x200, scoped, tag = 'prefetched SMEM operand 0']
  %s0 = inlined_call_operand.vmem [shape: s32[1,8], index: 0, kind: input, shape index: {}]
  %s1 = inlined_call_operand.vmem [shape: f32[64,32], index: 1, kind: input, shape index: {}]
  %s2 = inlined_call_operand.vmem [shape: f32[32,128], index: 2, kind: input, shape index: {}]
  %s3 = inlined_call_operand.vmem [shape: f32[32,128], index: 3, kind: input, shape index: {}]
  %s4 = inlined_call_operand.vmem [shape: f32[1,128], index: 4, kind: input, shape index: {}]
  %s5 = inlined_call_operand.vmem [shape: f32[32,128], index: 5, kind: input, shape index: {}]
  %s6 = inlined_call_operand.vmem [shape: f32[32,128], index: 6, kind: input, shape index: {}]
  %s7 = inlined_call_operand.vmem [shape: f32[1,128], index: 7, kind: input, shape index: {}]
  %s8 = inlined_call_operand.vmem [shape: f32[32,128], index: 8, kind: input, shape index: {}]
  %s9 = inlined_call_operand.vmem [shape: f32[1,128], index: 9, kind: input, shape index: {}]
  %s10 = inlined_call_operand.vmem [shape: f32[8,128], index: 10, kind: input, shape index: {}]
  %s11 = inlined_call_operand.hbm [shape: f32[1,8,128], index: 11, kind: output, shape index: {0}]
  %s12 = inlined_call_operand.vmem [shape: f32[8,128], index: 12, kind: output, shape index: {1}]
  %13 = xla_tuple %s11, %s12
  %s14 = sld [smem:[#allocation0]]
  $region62: #{decoder_forward_seq.1} parent=0
    _
  %s16 = ssub.s32 1, %s14
  %s17 = scalar_select 0, %s16, %s14
  %s19 = sshll.u32 %s0, 4
  %s20 = int_to_ptr.vmem [resolvable:$true] %s19
  %22 = dma.vmem_to_smem %s20, 16, [#allocation3], [#allocation2]
  %24 = dma.done [#allocation2], 16
  %25 = sfence
  $region1: #{decoder_forward_seq.1} parent=0
    #allocation4 [shape = 'u8[4096]{0}', space=vmem, size = 0x1000, scoped, tag = 'output window, operand 0, single buffered']
    #allocation5 [shape = 's32[1]{0}', space=sflag, size = 0x4, scoped, tag = 'scoped memory for decoder_forward_seq.1']
    %26 = vsyncpa [#allocation5], 0
    // Predicated region
    $region2: #{decoder_forward_seq.1} parent=1 // pred_check
      _
    $region3: #{decoder_forward_seq.1} parent=1 // pred_check_branch
      %28 = sbr.rel (0) target = $region5
    $region4: #{decoder_forward_seq.1} parent=1 // pred_region
      _
    $region5: #{decoder_forward_seq.1} parent=1 // pred_fallthru
      _
    // Predicated region
    $region6: #{decoder_forward_seq.1} parent=1 // pred_check
      _
    $region7: #{decoder_forward_seq.1} parent=1 // pred_check_branch
      %30 = sbr.rel (0) target = $region9
    $region8: #{decoder_forward_seq.1} parent=1 // pred_region
      _
    $region9: #{decoder_forward_seq.1} parent=1 // pred_fallthru
      _
    // Predicated region
    $region10: #{decoder_forward_seq.1} parent=1 // pred_check
      _
    $region11: #{decoder_forward_seq.1} parent=1 // pred_check_branch
      %32 = sbr.rel (0) target = $region13
    $region12: #{decoder_forward_seq.1} parent=1 // pred_region
      _
    $region13: #{decoder_forward_seq.1} parent=1 // pred_fallthru
      _
    // Predicated region
    $region14: #{decoder_forward_seq.1} parent=1 // pred_check
      _
    $region15: #{decoder_forward_seq.1} parent=1 // pred_check_branch
      %34 = sbr.rel (0) target = $region17
    $region16: #{decoder_forward_seq.1} parent=1 // pred_region
      _
    $region17: #{decoder_forward_seq.1} parent=1 // pred_fallthru
      _
    // Predicated region
    $region18: #{decoder_forward_seq.1} parent=1 // pred_check
      _
    $region19: #{decoder_forward_seq.1} parent=1 // pred_check_branch
      %36 = sbr.rel (0) target = $region21
    $region20: #{decoder_forward_seq.1} parent=1 // pred_region
      _
    $region21: #{decoder_forward_seq.1} parent=1 // pred_fallthru
      _
    // Predicated region
    $region22: #{decoder_forward_seq.1} parent=1 // pred_check
      _
    $region23: #{decoder_forward_seq.1} parent=1 // pred_check_branch
      %38 = sbr.rel (0) target = $region25
    $region24: #{decoder_forward_seq.1} parent=1 // pred_region
      _
    $region25: #{decoder_forward_seq.1} parent=1 // pred_fallthru
      _
    // Predicated region
    $region26: #{decoder_forward_seq.1} parent=1 // pred_check
      _
    $region27: #{decoder_forward_seq.1} parent=1 // pred_check_branch
      %40 = sbr.rel (0) target = $region29
    $region28: #{decoder_forward_seq.1} parent=1 // pred_region
      _
    $region29: #{decoder_forward_seq.1} parent=1 // pred_fallthru
      _
    // Predicated region
    $region30: #{decoder_forward_seq.1} parent=1 // pred_check
      _
    $region31: #{decoder_forward_seq.1} parent=1 // pred_check_branch
      %42 = sbr.rel (0) target = $region33
    $region32: #{decoder_forward_seq.1} parent=1 // pred_region
      _
    $region33: #{decoder_forward_seq.1} parent=1 // pred_fallthru
      _
    // Predicated region
    $region34: #{decoder_forward_seq.1} parent=1 // pred_check
      _
    $region35: #{decoder_forward_seq.1} parent=1 // pred_check_branch
      %44 = sbr.rel (0) target = $region37
    $region36: #{decoder_forward_seq.1} parent=1 // pred_region
      _
    $region37: #{decoder_forward_seq.1} parent=1 // pred_fallthru
      _
    // Predicated region
    $region38: #{decoder_forward_seq.1} parent=1 // pred_check
      _
    $region39: #{decoder_forward_seq.1} parent=1 // pred_check_branch
      %46 = sbr.rel (0) target = $region41
    $region40: #{decoder_forward_seq.1} parent=1 // pred_region
      _
    $region41: #{decoder_forward_seq.1} parent=1 // pred_fallthru
      _
    %p47 = scmp.eq.s32.totalorder 0, 0
    // Predicated region
    $region42: #{decoder_forward_seq.1} parent=1 // pred_check
      %p48 = pneg %p47
    $region43: #{decoder_forward_seq.1} parent=1 // pred_check_branch
      %50 = sbr.rel (%p48) target = $region45
    $region44: #{decoder_forward_seq.1} parent=1 // pred_region
      %v51 = vld [vmem:[%s10] sm:$0xff]
      %52 = vst [vmem:[%s12] sm:$0xff] %v51
    $region45: #{decoder_forward_seq.1} parent=1 // pred_fallthru
      _
    %s53 = smul.u32 0, 128
    %s54 = sld [smem:[#allocation3 + %s53]]
    %p55 = scmp.gt.s32.totalorder %s54, 0
    %s56 = scalar_select %p55, %s54, 0
    %p57 = scmp.lt.s32.totalorder %s56, 63
    %s58 = scalar_select %p57, %s56, 63
    %s59 = scalar_lea.vmem %s1, %s58
    %v60 = vld [vmem:[%s59] sm:$0x1]
    %s61 = sadd.s32 %s53, 1
    %s62 = sld [smem:[#allocation3 + %s61]]
    %p63 = scmp.gt.s32.totalorder %s62, 0
    %s64 = scalar_select %p63, %s62, 0
    %p65 = scmp.lt.s32.totalorder %s64, 63
    %s66 = scalar_select %p65, %s64, 63
    %s67 = scalar_lea.vmem %s1, %s66
    %v68 = vld [vmem:[%s67] sm:$0x1]
    %s69 = sadd.s32 %s53, 2
    %s70 = sld [smem:[#allocation3 + %s69]]
    %p71 = scmp.gt.s32.totalorder %s70, 0
    %s72 = scalar_select %p71, %s70, 0
    %p73 = scmp.lt.s32.totalorder %s72, 63
    %s74 = scalar_select %p73, %s72, 63
    %s75 = scalar_lea.vmem %s1, %s74
    %v76 = vld [vmem:[%s75] sm:$0x1]
    %s77 = sadd.s32 %s53, 3
    %s78 = sld [smem:[#allocation3 + %s77]]
    %p79 = scmp.gt.s32.totalorder %s78, 0
    %s80 = scalar_select %p79, %s78, 0
    %p81 = scmp.lt.s32.totalorder %s80, 63
    %s82 = scalar_select %p81, %s80, 63
    %s83 = scalar_lea.vmem %s1, %s82
    %v84 = vld [vmem:[%s83] sm:$0x1]
    %s85 = sadd.s32 %s53, 4
    %s86 = sld [smem:[#allocation3 + %s85]]
    %p87 = scmp.gt.s32.totalorder %s86, 0
    %s88 = scalar_select %p87, %s86, 0
    %p89 = scmp.lt.s32.totalorder %s88, 63
    %s90 = scalar_select %p89, %s88, 63
    %s91 = scalar_lea.vmem %s1, %s90
    %v92 = vld [vmem:[%s91] sm:$0x1]
    %s93 = sadd.s32 %s53, 5
    %s94 = sld [smem:[#allocation3 + %s93]]
    %p95 = scmp.gt.s32.totalorder %s94, 0
    %s96 = scalar_select %p95, %s94, 0
    %p97 = scmp.lt.s32.totalorder %s96, 63
    %s98 = scalar_select %p97, %s96, 63
    %s99 = scalar_lea.vmem %s1, %s98
    %v100 = vld [vmem:[%s99] sm:$0x1]
    %s101 = sadd.s32 %s53, 6
    %s102 = sld [smem:[#allocation3 + %s101]]
    %p103 = scmp.gt.s32.totalorder %s102, 0
    %s104 = scalar_select %p103, %s102, 0
    %p105 = scmp.lt.s32.totalorder %s104, 63
    %s106 = scalar_select %p105, %s104, 63
    %s107 = scalar_lea.vmem %s1, %s106
    %v108 = vld [vmem:[%s107] sm:$0x1]
    %s109 = sadd.s32 %s53, 7
    %s110 = sld [smem:[#allocation3 + %s109]]
    %p111 = scmp.gt.s32.totalorder %s110, 0
    %s112 = scalar_select %p111, %s110, 0
    %p113 = scmp.lt.s32.totalorder %s112, 63
    %s114 = scalar_select %p113, %s112, 63
    %s115 = scalar_lea.vmem %s1, %s114
    %v116 = vld [vmem:[%s115] sm:$0x1]
    %v118 = vrot.slane %v68, 7
    %v121 = vrot.slane %v76, 6
    %v124 = vrot.slane %v84, 5
    %v127 = vrot.slane %v92, 4
    %v130 = vrot.slane %v100, 3
    %v133 = vrot.slane %v108, 2
    %v136 = vrot.slane %v116, 1
    %vm138 = vcmask 1040384
    %v139 = vsel %vm138, %v60, %v118
    %vm140 = vcmask 1041408
    %v141 = vsel %vm140, %v139, %v121
    %vm142 = vcmask 1042432
    %v143 = vsel %vm142, %v141, %v124
    %vm144 = vcmask 1043456
    %v145 = vsel %vm144, %v143, %v127
    %vm146 = vcmask 1044480
    %v147 = vsel %vm146, %v145, %v130
    %vm148 = vcmask 1045504
    %v149 = vsel %vm148, %v147, %v133
    %vm150 = vcmask 1046528
    %v151 = vsel %vm150, %v149, %v136
    %v152 = vld [vmem:[%s12] sm:$0xff]
    %v153 = vld [vmem:[%s2] sm:$0xff]
    %v154 = vld [vmem:[%s2 + $0x8] sm:$0xff]
    %v155 = vld [vmem:[%s2 + $0x10] sm:$0xff]
    %v156 = vld [vmem:[%s2 + $0x18] sm:$0xff]
    %v157 = vld [vmem:[%s3] sm:$0xff]
    %v158 = vld [vmem:[%s3 + $0x8] sm:$0xff]
    %v159 = vld [vmem:[%s3 + $0x10] sm:$0xff]
    %v160 = vld [vmem:[%s3 + $0x18] sm:$0xff]
    %vm161 = vcmask 261120
    %v163 = vsel %vm161, %v152, 0
    %165 = vmatpush.msra.mxu0 0.0
    %166 = vmatpush.msra.mxu0 0.0
    %167 = vmatpush.msra.mxu0 0.0
    %168 = vmatpush.msra.mxu0 0.0
    %169 = vmatpush.msra.mxu0 0.0
    %170 = vmatpush.msra.mxu0 0.0
    %171 = vmatpush.msra.mxu0 0.0
    %172 = vmatpush.msra.mxu0 0.0
    %173 = vmatpush.msra.mxu0 0.0
    %174 = vmatpush.msra.mxu0 0.0
    %175 = vmatpush.msra.mxu0 0.0
    %176 = vmatpush.msra.mxu0 0.0
    %177 = vmatpush.msra.mxu0 %v160
    %178 = vmatpush.msra.mxu0 %v159
    %179 = vmatpush.msra.mxu0 %v158
    %180 = vmatpush.msra.mxu0 %v157
    %181 = vmatmul.f32.gmra.mxu0 %v163
    %v182 = vpop.f32.mrf.mxu0
    %v183 = vadd.f32 0.0, %v182
    %184 = vdwg.mxu0
    %v186 = vsel %vm161, %v151, 0
    %188 = vmatpush.msra.mxu0 0.0
    %189 = vmatpush.msra.mxu0 0.0
    %190 = vmatpush.msra.mxu0 0.0
    %191 = vmatpush.msra.mxu0 0.0
    %192 = vmatpush.msra.mxu0 0.0
    %193 = vmatpush.msra.mxu0 0.0
    %194 = vmatpush.msra.mxu0 0.0
    %195 = vmatpush.msra.mxu0 0.0
    %196 = vmatpush.msra.mxu0 0.0
    %197 = vmatpush.msra.mxu0 0.0
    %198 = vmatpush.msra.mxu0 0.0
    %199 = vmatpush.msra.mxu0 0.0
    %200 = vmatpush.msra.mxu0 %v156
    %201 = vmatpush.msra.mxu0 %v155
    %202 = vmatpush.msra.mxu0 %v154
    %203 = vmatpush.msra.mxu0 %v153
    %204 = vmatmul.f32.gmra.mxu0 %v186
    %v205 = vpop.f32.mrf.mxu0
    %v206 = vadd.f32 %v183, %v205
    %207 = vdwg.mxu0
    %v208 = vld [vmem:[%s4] sm:$0x1]
    %v210 = vperm.slane %v208, 0
    %v212 = vadd.f32 %v206, %v210
    %v213 = vxor.u32 %v212, 2147483648
    %v214 = vmul.f32 %v213, 1.442695
    %v215 = vpow.pop %v214
    %v216 = vadd.f32 %v215, 1.0
    %v217 = vrcp.pop %v216
    %v218 = vmul.f32 %v216, %v217
    %v219 = vsub.f32 1.0, %v218
    %v220 = vmul.f32 %v217, %v219
    %v221 = vadd.f32 %v217, %v220
    %vm222 = vweird.f32 %v216
    %vm223 = vweird.f32 %v217
    %vm224 = vmor %vm222, %vm223
    %v225 = vsel %vm224, %v217, %v221
    %v226 = vand.u32 2147483647, %v216
    %vm227 = vcmp.eq.f32.partialorder %v226, 8.507059e+37
    %v228 = vand.u32 %v216, 2147483648
    %v229 = vor.u32 1.1754944e-38, %v228
    %v230 = vsel %vm227, %v229, %v225
    %v231 = vmul.f32 1.0, %v230
    %v232 = vtanh.pop %v212
    %233 = vrot.lane.b32.xlu0 %v152, 96
    %v234 = vpop.permute.xlu0 %233
    %v236 = vmul.f32 %v231, %v234
    %238 = vrot.lane.b32.xlu0 %v232, 64
    %v239 = vpop.permute.xlu0 %238
    %v241 = vmul.f32 %v231, %v239
    %243 = vrot.lane.b32.xlu0 %v241, 32
    %v244 = vpop.permute.xlu0 %243
    %v246 = vadd.f32 %v236, %v244
    %v247 = vtanh.pop %v246
    %249 = vrot.lane.b32.xlu0 %v247, 64
    %v250 = vpop.permute.xlu0 %249
    %v252 = vmul.f32 %v231, %v250
    %v253 = vld [vmem:[%s5] sm:$0xff]
    %v254 = vld [vmem:[%s5 + $0x8] sm:$0xff]
    %v255 = vld [vmem:[%s5 + $0x10] sm:$0xff]
    %v256 = vld [vmem:[%s5 + $0x18] sm:$0xff]
    %v257 = vld [vmem:[%s6] sm:$0xff]
    %v258 = vld [vmem:[%s6 + $0x8] sm:$0xff]
    %v259 = vld [vmem:[%s6 + $0x10] sm:$0xff]
    %v260 = vld [vmem:[%s6 + $0x18] sm:$0xff]
    %v261 = vsel %vm161, %v234, 0
    %263 = vmatpush.msra.mxu0 0.0
    %264 = vmatpush.msra.mxu0 0.0
    %265 = vmatpush.msra.mxu0 0.0
    %266 = vmatpush.msra.mxu0 0.0
    %267 = vmatpush.msra.mxu0 0.0
    %268 = vmatpush.msra.mxu0 0.0
    %269 = vmatpush.msra.mxu0 0.0
    %270 = vmatpush.msra.mxu0 0.0
    %271 = vmatpush.msra.mxu0 0.0
    %272 = vmatpush.msra.mxu0 0.0
    %273 = vmatpush.msra.mxu0 0.0
    %274 = vmatpush.msra.mxu0 0.0
    %275 = vmatpush.msra.mxu0 %v260
    %276 = vmatpush.msra.mxu0 %v259
    %277 = vmatpush.msra.mxu0 %v258
    %278 = vmatpush.msra.mxu0 %v257
    %279 = vmatmul.f32.gmra.mxu0 %v261
    %v280 = vpop.f32.mrf.mxu0
    %v281 = vadd.f32 0.0, %v280
    %282 = vdwg.mxu0
    %284 = vrot.lane.b32.xlu0 %v252, 32
    %v285 = vpop.permute.xlu0 %284
    %v286 = vsel %vm161, %v285, 0
    %288 = vmatpush.msra.mxu0 0.0
    %289 = vmatpush.msra.mxu0 0.0
    %290 = vmatpush.msra.mxu0 0.0
    %291 = vmatpush.msra.mxu0 0.0
    %292 = vmatpush.msra.mxu0 0.0
    %293 = vmatpush.msra.mxu0 0.0
    %294 = vmatpush.msra.mxu0 0.0
    %295 = vmatpush.msra.mxu0 0.0
    %296 = vmatpush.msra.mxu0 0.0
    %297 = vmatpush.msra.mxu0 0.0
    %298 = vmatpush.msra.mxu0 0.0
    %299 = vmatpush.msra.mxu0 0.0
    %300 = vmatpush.msra.mxu0 %v256
    %301 = vmatpush.msra.mxu0 %v255
    %302 = vmatpush.msra.mxu0 %v254
    %303 = vmatpush.msra.mxu0 %v253
    %304 = vmatmul.f32.gmra.mxu0 %v286
    %v305 = vpop.f32.mrf.mxu0
    %v306 = vadd.f32 %v281, %v305
    %307 = vdwg.mxu0
    %v308 = vld [vmem:[%s7] sm:$0x1]
    %v310 = vperm.slane %v308, 0
    %v312 = vadd.f32 %v306, %v310
    %v313 = vxor.u32 %v312, 2147483648
    %v314 = vmul.f32 %v313, 1.442695
    %v315 = vpow.pop %v314
    %v316 = vadd.f32 %v315, 1.0
    %v317 = vrcp.pop %v316
    %v318 = vmul.f32 %v316, %v317
    %v319 = vsub.f32 1.0, %v318
    %v320 = vmul.f32 %v317, %v319
    %v321 = vadd.f32 %v317, %v320
    %vm322 = vweird.f32 %v316
    %vm323 = vweird.f32 %v317
    %vm324 = vmor %vm322, %vm323
    %v325 = vsel %vm324, %v317, %v321
    %v326 = vand.u32 2147483647, %v316
    %vm327 = vcmp.eq.f32.partialorder %v326, 8.507059e+37
    %v328 = vand.u32 %v316, 2147483648
    %v329 = vor.u32 1.1754944e-38, %v328
    %v330 = vsel %vm327, %v329, %v325
    %v331 = vmul.f32 1.0, %v330
    %v332 = vtanh.pop %v312
    %333 = vrot.lane.b32.xlu0 %v152, 64
    %v334 = vpop.permute.xlu0 %333
    %v336 = vmul.f32 %v331, %v334
    %338 = vrot.lane.b32.xlu0 %v332, 64
    %v339 = vpop.permute.xlu0 %338
    %v341 = vmul.f32 %v331, %v339
    %343 = vrot.lane.b32.xlu0 %v341, 32
    %v344 = vpop.permute.xlu0 %343
    %v346 = vadd.f32 %v336, %v344
    %v347 = vtanh.pop %v346
    %349 = vrot.lane.b32.xlu0 %v347, 64
    %v350 = vpop.permute.xlu0 %349
    %v352 = vmul.f32 %v331, %v350
    %355 = vrot.lane.b32.xlu0 %v352, 64
    %v356 = vpop.permute.xlu0 %355
    %359 = vrot.lane.b32.xlu0 %v246, 32
    %v360 = vpop.permute.xlu0 %359
    %363 = vrot.lane.b32.xlu0 %v346, 64
    %v364 = vpop.permute.xlu0 %363
    %v366 = vsel %vm161, %v285, %v356
    %vm367 = vcmask 523264
    %v368 = vsel %vm367, %v366, %v360
    %vm369 = vcmask 785408
    %v370 = vsel %vm369, %v368, %v364
    %371 = vst [vmem:[%s12] sm:$0xff] %v370
    %v372 = vld [vmem:[%s8] sm:$0xff]
    %v373 = vld [vmem:[%s8 + $0x8] sm:$0xff]
    %v374 = vld [vmem:[%s8 + $0x10] sm:$0xff]
    %v375 = vld [vmem:[%s8 + $0x18] sm:$0xff]
    %v376 = vld [vmem:[%s9] sm:$0x1]
    %v378 = vperm.slane %v376, 0
    %380 = vrot.lane.b32.xlu0 %v352, 32
    %v381 = vpop.permute.xlu0 %380
    %v382 = vsel %vm161, %v381, 0
    %384 = vmatpush.msra.mxu0 0.0
    %385 = vmatpush.msra.mxu0 0.0
    %386 = vmatpush.msra.mxu0 0.0
    %387 = vmatpush.msra.mxu0 0.0
    %388 = vmatpush.msra.mxu0 0.0
    %389 = vmatpush.msra.mxu0 0.0
    %390 = vmatpush.msra.mxu0 0.0
    %391 = vmatpush.msra.mxu0 0.0
    %392 = vmatpush.msra.mxu0 0.0
    %393 = vmatpush.msra.mxu0 0.0
    %394 = vmatpush.msra.mxu0 0.0
    %395 = vmatpush.msra.mxu0 0.0
    %396 = vmatpush.msra.mxu0 %v375
    %397 = vmatpush.msra.mxu0 %v374
    %398 = vmatpush.msra.mxu0 %v373
    %399 = vmatpush.msra.mxu0 %v372
    %400 = vmatmul.f32.gmra.mxu0 %v382
    %v401 = vpop.f32.mrf.mxu0
    %v402 = vadd.f32 %v378, %v401
    %403 = vdwg.mxu0
    %404 = vst [vmem:[#allocation4] sm:$0xff] %v402
    // Predicated region
    $region46: #{decoder_forward_seq.1} parent=1 // pred_check
      _
    $region47: #{decoder_forward_seq.1} parent=1 // pred_check_branch
      %406 = sbr.rel (0) target = $region49
    $region48: #{decoder_forward_seq.1} parent=1 // pred_region
      %408 = vsyncadd [#allocation5], 0
      %s410 = sshll.u32 [#allocation4], 4
      %s411 = int_to_ptr.vmem [resolvable:$true] %s410
      %s412 = sshll.u32 %s11, 4
      %s413 = int_to_ptr.hbm [resolvable:$true] %s412
      %415 = dma.vmem_to_hbm [thread:$0]  %s411, 128, %s413, [#allocation5]
    $region49: #{decoder_forward_seq.1} parent=1 // pred_fallthru
      _
    // Predicated region
    $region50: #{decoder_forward_seq.1} parent=1 // pred_check
      _
    $region51: #{decoder_forward_seq.1} parent=1 // pred_check_branch
      %417 = sbr.rel (0) target = $region53
    $region52: #{decoder_forward_seq.1} parent=1 // pred_region
      _
    $region53: #{decoder_forward_seq.1} parent=1 // pred_fallthru
      _
    // Predicated region
    $region54: #{decoder_forward_seq.1} parent=1 // pred_check
      _
    $region55: #{decoder_forward_seq.1} parent=1 // pred_check_branch
      %419 = sbr.rel (0) target = $region57
    $region56: #{decoder_forward_seq.1} parent=1 // pred_region
      %421 = dma.done [#allocation5], 128
    $region57: #{decoder_forward_seq.1} parent=1 // pred_fallthru
      _
    // Predicated region
    $region58: #{decoder_forward_seq.1} parent=1 // pred_check
      _
    $region59: #{decoder_forward_seq.1} parent=1 // pred_check_branch
      %423 = sbr.rel (0) target = $region61
    $region60: #{decoder_forward_seq.1} parent=1 // pred_region
      _
    $region61: #{decoder_forward_seq.1} parent=1 // pred_fallthru
      _
    %424 = vsyncpa [#allocation5], 1

</llo_original>
